<compile_context>
chip_gen: v6e
topology: v6e:2x2x1
jax: 0.10.0
libtpu: 0.0.40
codegen_flags: <defaults>
</compile_context>

<pallas_src>
import functools

import jax
import jax.numpy as jnp
from jax.experimental import pallas as pl
from jax.experimental.pallas import tpu as pltpu


def gru_recurrence_kernel(gi_ref, h0_ref, whh_ref, bhn_ref, out_ref, h_scr):
    """One grid step == one TILE_T block of time steps of the GRU recurrence.

    gi_ref : (TILE_T, B, 3H)  precomputed input projections (biases folded in),
                              gate order (r, z, n)
    h0_ref : (B, H)           initial hidden state (read only at grid step 0)
    whh_ref: (H, 3H)          fused hidden-to-hidden weights, gate order (r, z, n)
    bhn_ref: (1, H)           b_hh for the n gate (must stay inside r*(...))
    out_ref: (TILE_T, B, H)   output block
    h_scr  : (B, H) f32       hidden-state carry across grid iterations
    """
    tile_t, bsz, three_h = gi_ref.shape
    hdim = three_h // 3

    @pl.when(pl.program_id(0) == 0)
    def _():
        h_scr[...] = h0_ref[...].astype(jnp.float32)

    whh = whh_ref[...].astype(jnp.float32)                           # (H, 3H)
    # Hoist the broadcast out of the unrolled loop (broadcasts are not CSE'd).
    b_hn = jnp.broadcast_to(bhn_ref[...], (bsz, hdim)).astype(jnp.float32)

    h = h_scr[...]                                                   # (B, H)
    for t in range(tile_t):   # fully unrolled; only h @ Whh sits on the serial path
        gi = gi_ref[t].astype(jnp.float32)                           # (B, 3H)
        gh = jnp.dot(h, whh, preferred_element_type=jnp.float32)     # (B, 3H)
        # Fused sigmoid over the r/z halves (one wide EUP launch).
        rz = jax.nn.sigmoid(gi[:, : 2 * hdim] + gh[:, : 2 * hdim])
        r = rz[:, :hdim]
        z = rz[:, hdim:]
        n = jnp.tanh(gi[:, 2 * hdim:] + r * (gh[:, 2 * hdim:] + b_hn))
        h = (1.0 - z) * n + z * h
        out_ref[t] = h.astype(out_ref.dtype)
    h_scr[...] = h


@jax.jit
def gru_forward_pallas(x, h0, w_ih, w_hh, b_ih, b_hh):
    """x: (T, B, U), h0: (B, H), w_ih: (3H, U), w_hh: (3H, H), b_*: (3H,).

    Returns (output (T, B, H), h_n (1, B, H)) matching nn.GRU's outputs.
    """
    T, B, U = x.shape
    H = h0.shape[-1]
    out_dtype = x.dtype

    # ---- glue in plain JAX (runs under the same jit) -------------------------
    # Fused, matmul-ready weights (torch stores rows as [W_r; W_z; W_n]).
    wih_f = jnp.transpose(w_ih).astype(jnp.float32)                  # (U, 3H)
    whh_f = jnp.transpose(w_hh).astype(jnp.float32)                  # (H, 3H)

    # Bias folding: b_ih + [b_hh_r, b_hh_z, 0] goes into the input projection;
    # only b_hh_n stays inside the recurrence (inside the r*(...) term).
    b_hh_r, b_hh_z, b_hh_n = jnp.split(b_hh, 3)
    bias_i = (b_ih + jnp.concatenate(
        [b_hh_r, b_hh_z, jnp.zeros_like(b_hh_n)])).astype(jnp.float32)   # (3H,)
    b_hn = b_hh_n.reshape(1, H).astype(jnp.float32)                      # (1, H)

    # Hoisted input projection: one big MXU matmul with M = T*B (no recurrent dep).
    gi_all = (jnp.einsum('tbu,uh->tbh', x.astype(jnp.float32), wih_f,
                         preferred_element_type=jnp.float32)
              + bias_i)                                              # (T, B, 3H) f32

    # ---- time tiling ---------------------------------------------------------
    TILE_T = T if T <= 64 else 64
    num_tiles = pl.cdiv(T, TILE_T)
    T_pad = num_tiles * TILE_T
    if T_pad != T:
        gi_all = jnp.pad(gi_all, ((0, T_pad - T), (0, 0), (0, 0)))

    out_full = pl.pallas_call(
        gru_recurrence_kernel,
        out_shape=jax.ShapeDtypeStruct((T_pad, B, H), out_dtype),
        grid_spec=pltpu.PrefetchScalarGridSpec(
            num_scalar_prefetch=0,
            grid=(num_tiles,),
            in_specs=[
                pl.BlockSpec((TILE_T, B, 3 * H), lambda t: (t, 0, 0)),  # gi block
                pl.BlockSpec((B, H), lambda t: (0, 0)),                 # h0 (resident)
                pl.BlockSpec((H, 3 * H), lambda t: (0, 0)),             # W_hh fused
                pl.BlockSpec((1, H), lambda t: (0, 0)),                 # b_hh_n
            ],
            out_specs=pl.BlockSpec((TILE_T, B, H), lambda t: (t, 0, 0)),
            scratch_shapes=[pltpu.VMEM((B, H), jnp.float32)],           # h carry
        ),
        compiler_params=pltpu.CompilerParams(
            dimension_semantics=("arbitrary",),   # time recurrence is sequential
        ),
    )(gi_all, h0.astype(jnp.float32), whh_f, b_hn)

    out = out_full[:T]
    h_n = out_full[T - 1:T]          # h_n == output[T-1]; no separate kernel output
    return out, h_n


def gru_forward_ref(x, h0, w_ih, w_hh, b_ih, b_hh):
    """Pure-JAX reference matching torch.nn.GRU (gate order r, z, n)."""
    def step(h, x_t):
        gi = x_t @ w_ih.T + b_ih
        gh = h @ w_hh.T + b_hh
        i_r, i_z, i_n = jnp.split(gi, 3, axis=-1)
        h_r, h_z, h_n = jnp.split(gh, 3, axis=-1)
        r = jax.nn.sigmoid(i_r + h_r)
        z = jax.nn.sigmoid(i_z + h_z)
        n = jnp.tanh(i_n + r * h_n)
        h_new = (1.0 - z) * n + z * h
        return h_new, h_new

    h_last, ys = jax.lax.scan(step, h0, x)
    return ys, h_last[None]


class BenchmarkRNNPallas:
    """JAX/Pallas port of Benchmark_RNN with recurrent_cell_type='gru'."""

    def __init__(self, n_features_U, n_state_neurons, n_features_Y,
                 forecast_horizon, key):
        self.n_features_U = n_features_U
        self.n_state_neurons = n_state_neurons
        self.n_features_Y = n_features_Y
        self.forecast_horizon = forecast_horizon

        H, U = n_state_neurons, n_features_U
        k = 1.0 / jnp.sqrt(jnp.float32(H))
        ks = jax.random.split(key, 7)
        # nn.GRU parameters (uniform(-1/sqrt(H), 1/sqrt(H)), torch layout).
        self.w_ih = jax.random.uniform(ks[0], (3 * H, U), jnp.float32, -k, k)
        self.w_hh = jax.random.uniform(ks[1], (3 * H, H), jnp.float32, -k, k)
        self.b_ih = jax.random.uniform(ks[2], (3 * H,), jnp.float32, -k, k)
        self.b_hh = jax.random.uniform(ks[3], (3 * H,), jnp.float32, -k, k)
        # init_state = torch.rand(1, H)  (float32 here instead of float64).
        self.init_state = jax.random.uniform(ks[4], (1, H), jnp.float32)
        # state_output Linear (defined in __init__, unused by forward()).
        out_sz = n_features_Y * forecast_horizon
        self.lin_w = jax.random.uniform(ks[5], (out_sz, H), jnp.float32, -k, k)
        self.lin_b = jax.random.uniform(ks[6], (out_sz,), jnp.float32, -k, k)

    def __call__(self, past_features):
        # past_features: (T, B, U); batchsize = past_features.size(1)
        B = past_features.shape[1]
        h0 = jnp.broadcast_to(self.init_state, (B, self.n_state_neurons))  # repeat_init_state
        return gru_forward_pallas(past_features, h0, self.w_ih, self.w_hh,
                                  self.b_ih, self.b_hh)

    def reference(self, past_features):
        B = past_features.shape[1]
        h0 = jnp.broadcast_to(self.init_state, (B, self.n_state_neurons))
        return gru_forward_ref(past_features, h0, self.w_ih, self.w_hh,
                               self.b_ih, self.b_hh)


if __name__ == "__main__":
    key = jax.random.PRNGKey(0)
    k_param, k_x = jax.random.split(key)

    # Small shapes consistent with the module's forward.
    T, B = 8, 4                  # seq len, batch
    n_features_U = 8
    n_state_neurons = 32
    n_features_Y = 2
    forecast_horizon = 4

    model = BenchmarkRNNPallas(n_features_U, n_state_neurons, n_features_Y,
                               forecast_horizon, k_param)

    past_features = jax.random.normal(k_x, (T, B, n_features_U), jnp.float32)

    out, h_n = model(past_features)
    out = jax.block_until_ready(out)
    h_n = jax.block_until_ready(h_n)

    # Correctness check against pure-JAX GRU reference.
    out_ref, h_n_ref = model.reference(past_features)
    assert out.shape == (T, B, n_state_neurons)
    assert h_n.shape == (1, B, n_state_neurons)
    assert jnp.allclose(out, out_ref, atol=1e-5, rtol=1e-5)
    assert jnp.allclose(h_n, h_n_ref, atol=1e-5, rtol=1e-5)

    print("KERNEL_OK")
</pallas_src>

<mosaic_0001>
module attributes {stable_mosaic.version = 11 : i64} {
  func.func @gru_recurrence_kernel(%arg0: i32, %arg1: memref<8x4x96xf32, #tpu.memory_space<vmem>>, %arg2: memref<4x32xf32, #tpu.memory_space<vmem>>, %arg3: memref<32x96xf32, #tpu.memory_space<vmem>>, %arg4: memref<1x32xf32, #tpu.memory_space<vmem>>, %arg5: memref<8x4x32xf32, #tpu.memory_space<vmem>>, %arg6: memref<4x32xf32, #tpu.memory_space<vmem>>) attributes {dimension_semantics = [#tpu.dimension_semantics<arbitrary>], iteration_bounds = array<i64: 1>, scalar_prefetch = 0 : i64, scratch_operands = 1 : i64, tpu.core_type = #tpu.core_type<tc>, window_params = [{transform_indices = @transform_0, window_bounds = array<i64: 8, 4, 96>}, {pipeline_mode = #tpu.pipeline_mode<synchronous>, transform_indices = @transform_1, window_bounds = array<i64: 4, 32>}, {pipeline_mode = #tpu.pipeline_mode<synchronous>, transform_indices = @transform_2, window_bounds = array<i64: 32, 96>}, {pipeline_mode = #tpu.pipeline_mode<synchronous>, transform_indices = @transform_3, window_bounds = array<i64: 1, 32>}, {transform_indices = @transform_4, window_bounds = array<i64: 8, 4, 32>}]} {
    %c0_i32 = arith.constant 0 : i32
    %0 = arith.cmpi eq, %arg0, %c0_i32 : i32
    %1 = arith.extui %0 : i1 to i32
    %c0_i32_0 = arith.constant 0 : i32
    %2 = arith.cmpi ne, %1, %c0_i32_0 : i32
    scf.if %2 {
      %c0_72 = arith.constant 0 : index
      %c0_73 = arith.constant 0 : index
      %225 = vector.load %arg2[%c0_72, %c0_73] : memref<4x32xf32, #tpu.memory_space<vmem>>, vector<4x32xf32>
      %c0_74 = arith.constant 0 : index
      %c0_75 = arith.constant 0 : index
      %226 = vector.load %arg6[%c0_74, %c0_75] : memref<4x32xf32, #tpu.memory_space<vmem>>, vector<4x32xf32>
      tpu.vector_store %arg6[%c0_74, %c0_75], %225 {strides = array<i32>} : memref<4x32xf32, #tpu.memory_space<vmem>>, vector<4x32xf32>,
    } else {
    }
    %c0 = arith.constant 0 : index
    %c0_1 = arith.constant 0 : index
    %3 = vector.load %arg3[%c0, %c0_1] : memref<32x96xf32, #tpu.memory_space<vmem>>, vector<32x96xf32>
    %c0_2 = arith.constant 0 : index
    %c0_3 = arith.constant 0 : index
    %4 = vector.load %arg4[%c0_2, %c0_3] : memref<1x32xf32, #tpu.memory_space<vmem>>, vector<1x32xf32>
    %5 = vector.shape_cast %4 : vector<1x32xf32> to vector<1x32xf32>
    %6 = vector.broadcast %5 : vector<1x32xf32> to vector<4x32xf32>
    %c0_4 = arith.constant 0 : index
    %c0_5 = arith.constant 0 : index
    %7 = vector.load %arg6[%c0_4, %c0_5] : memref<4x32xf32, #tpu.memory_space<vmem>>, vector<4x32xf32>
    %c0_6 = arith.constant 0 : index
    %c0_7 = arith.constant 0 : index
    %c0_8 = arith.constant 0 : index
    %8 = vector.load %arg1[%c0_6, %c0_7, %c0_8] : memref<8x4x96xf32, #tpu.memory_space<vmem>>, vector<1x4x96xf32>
    %9 = vector.shape_cast %8 : vector<1x4x96xf32> to vector<4x96xf32>
    %cst = arith.constant dense<0.000000e+00> : vector<4x96xf32>
    %10 = tpu.matmul %7, %3, %cst {dimension_numbers = #tpu.dot_dimension_numbers<[1], [0], [0], [1], [0, 0, 1, 1], [], []>} : vector<4x32xf32>, vector<32x96xf32>, vector<4x96xf32> -> vector<4x96xf32>
    %11 = vector.extract_strided_slice %9 {offsets = [0, 0], sizes = [4, 64], strides = [1, 1]} : vector<4x96xf32> to vector<4x64xf32>
    %12 = vector.extract_strided_slice %10 {offsets = [0, 0], sizes = [4, 64], strides = [1, 1]} : vector<4x96xf32> to vector<4x64xf32>
    %13 = arith.addf %11, %12 : vector<4x64xf32>
    %14 = arith.negf %13 : vector<4x64xf32>
    %15 = math.exp %14 : vector<4x64xf32>
    %cst_9 = arith.constant 1.000000e+00 : f32
    %16 = vector.broadcast %cst_9 : f32 to vector<4x64xf32>
    %17 = arith.addf %16, %15 : vector<4x64xf32>
    %18 = arith.divf %16, %17 : vector<4x64xf32>
    %19 = vector.extract_strided_slice %18 {offsets = [0, 0], sizes = [4, 32], strides = [1, 1]} : vector<4x64xf32> to vector<4x32xf32>
    %20 = vector.extract_strided_slice %18 {offsets = [0, 32], sizes = [4, 32], strides = [1, 1]} : vector<4x64xf32> to vector<4x32xf32>
    %21 = vector.extract_strided_slice %9 {offsets = [0, 64], sizes = [4, 32], strides = [1, 1]} : vector<4x96xf32> to vector<4x32xf32>
    %22 = vector.extract_strided_slice %10 {offsets = [0, 64], sizes = [4, 32], strides = [1, 1]} : vector<4x96xf32> to vector<4x32xf32>
    %23 = arith.addf %22, %6 : vector<4x32xf32>
    %24 = arith.mulf %19, %23 : vector<4x32xf32>
    %25 = arith.addf %21, %24 : vector<4x32xf32>
    %26 = math.tanh %25 : vector<4x32xf32>
    %cst_10 = arith.constant 1.000000e+00 : f32
    %27 = vector.broadcast %cst_10 : f32 to vector<4x32xf32>
    %28 = arith.subf %27, %20 : vector<4x32xf32>
    %29 = arith.mulf %28, %26 : vector<4x32xf32>
    %30 = arith.mulf %20, %7 : vector<4x32xf32>
    %31 = arith.addf %29, %30 : vector<4x32xf32>
    %c0_11 = arith.constant 0 : index
    %c0_12 = arith.constant 0 : index
    %c0_13 = arith.constant 0 : index
    %32 = vector.load %arg5[%c0_11, %c0_12, %c0_13] : memref<8x4x32xf32, #tpu.memory_space<vmem>>, vector<1x4x32xf32>
    %33 = vector.shape_cast %32 : vector<1x4x32xf32> to vector<4x32xf32>
    %34 = vector.shape_cast %31 : vector<4x32xf32> to vector<1x4x32xf32>
    tpu.vector_store %arg5[%c0_11, %c0_12, %c0_13], %34 {strides = array<i32>} : memref<8x4x32xf32, #tpu.memory_space<vmem>>, vector<1x4x32xf32>,
    %c1 = arith.constant 1 : index
    %c0_14 = arith.constant 0 : index
    %c0_15 = arith.constant 0 : index
    %35 = vector.load %arg1[%c1, %c0_14, %c0_15] : memref<8x4x96xf32, #tpu.memory_space<vmem>>, vector<1x4x96xf32>
    %36 = vector.shape_cast %35 : vector<1x4x96xf32> to vector<4x96xf32>
    %cst_16 = arith.constant dense<0.000000e+00> : vector<4x96xf32>
    %37 = tpu.matmul %31, %3, %cst_16 {dimension_numbers = #tpu.dot_dimension_numbers<[1], [0], [0], [1], [0, 0, 1, 1], [], []>} : vector<4x32xf32>, vector<32x96xf32>, vector<4x96xf32> -> vector<4x96xf32>
    %38 = vector.extract_strided_slice %36 {offsets = [0, 0], sizes = [4, 64], strides = [1, 1]} : vector<4x96xf32> to vector<4x64xf32>
    %39 = vector.extract_strided_slice %37 {offsets = [0, 0], sizes = [4, 64], strides = [1, 1]} : vector<4x96xf32> to vector<4x64xf32>
    %40 = arith.addf %38, %39 : vector<4x64xf32>
    %41 = arith.negf %40 : vector<4x64xf32>
    %42 = math.exp %41 : vector<4x64xf32>
    %cst_17 = arith.constant 1.000000e+00 : f32
    %43 = vector.broadcast %cst_17 : f32 to vector<4x64xf32>
    %44 = arith.addf %43, %42 : vector<4x64xf32>
    %45 = arith.divf %43, %44 : vector<4x64xf32>
    %46 = vector.extract_strided_slice %45 {offsets = [0, 0], sizes = [4, 32], strides = [1, 1]} : vector<4x64xf32> to vector<4x32xf32>
    %47 = vector.extract_strided_slice %45 {offsets = [0, 32], sizes = [4, 32], strides = [1, 1]} : vector<4x64xf32> to vector<4x32xf32>
    %48 = vector.extract_strided_slice %36 {offsets = [0, 64], sizes = [4, 32], strides = [1, 1]} : vector<4x96xf32> to vector<4x32xf32>
    %49 = vector.extract_strided_slice %37 {offsets = [0, 64], sizes = [4, 32], strides = [1, 1]} : vector<4x96xf32> to vector<4x32xf32>
    %50 = arith.addf %49, %6 : vector<4x32xf32>
    %51 = arith.mulf %46, %50 : vector<4x32xf32>
    %52 = arith.addf %48, %51 : vector<4x32xf32>
    %53 = math.tanh %52 : vector<4x32xf32>
    %cst_18 = arith.constant 1.000000e+00 : f32
    %54 = vector.broadcast %cst_18 : f32 to vector<4x32xf32>
    %55 = arith.subf %54, %47 : vector<4x32xf32>
    %56 = arith.mulf %55, %53 : vector<4x32xf32>
    %57 = arith.mulf %47, %31 : vector<4x32xf32>
    %58 = arith.addf %56, %57 : vector<4x32xf32>
    %c1_19 = arith.constant 1 : index
    %c0_20 = arith.constant 0 : index
    %c0_21 = arith.constant 0 : index
    %59 = vector.load %arg5[%c1_19, %c0_20, %c0_21] : memref<8x4x32xf32, #tpu.memory_space<vmem>>, vector<1x4x32xf32>
    %60 = vector.shape_cast %59 : vector<1x4x32xf32> to vector<4x32xf32>
    %61 = vector.shape_cast %58 : vector<4x32xf32> to vector<1x4x32xf32>
    tpu.vector_store %arg5[%c1_19, %c0_20, %c0_21], %61 {strides = array<i32>} : memref<8x4x32xf32, #tpu.memory_space<vmem>>, vector<1x4x32xf32>,
    %c2 = arith.constant 2 : index
    %c0_22 = arith.constant 0 : index
    %c0_23 = arith.constant 0 : index
    %62 = vector.load %arg1[%c2, %c0_22, %c0_23] : memref<8x4x96xf32, #tpu.memory_space<vmem>>, vector<1x4x96xf32>
    %63 = vector.shape_cast %62 : vector<1x4x96xf32> to vector<4x96xf32>
    %cst_24 = arith.constant dense<0.000000e+00> : vector<4x96xf32>
    %64 = tpu.matmul %58, %3, %cst_24 {dimension_numbers = #tpu.dot_dimension_numbers<[1], [0], [0], [1], [0, 0, 1, 1], [], []>} : vector<4x32xf32>, vector<32x96xf32>, vector<4x96xf32> -> vector<4x96xf32>
    %65 = vector.extract_strided_slice %63 {offsets = [0, 0], sizes = [4, 64], strides = [1, 1]} : vector<4x96xf32> to vector<4x64xf32>
    %66 = vector.extract_strided_slice %64 {offsets = [0, 0], sizes = [4, 64], strides = [1, 1]} : vector<4x96xf32> to vector<4x64xf32>
    %67 = arith.addf %65, %66 : vector<4x64xf32>
    %68 = arith.negf %67 : vector<4x64xf32>
    %69 = math.exp %68 : vector<4x64xf32>
    %cst_25 = arith.constant 1.000000e+00 : f32
    %70 = vector.broadcast %cst_25 : f32 to vector<4x64xf32>
    %71 = arith.addf %70, %69 : vector<4x64xf32>
    %72 = arith.divf %70, %71 : vector<4x64xf32>
    %73 = vector.extract_strided_slice %72 {offsets = [0, 0], sizes = [4, 32], strides = [1, 1]} : vector<4x64xf32> to vector<4x32xf32>
    %74 = vector.extract_strided_slice %72 {offsets = [0, 32], sizes = [4, 32], strides = [1, 1]} : vector<4x64xf32> to vector<4x32xf32>
    %75 = vector.extract_strided_slice %63 {offsets = [0, 64], sizes = [4, 32], strides = [1, 1]} : vector<4x96xf32> to vector<4x32xf32>
    %76 = vector.extract_strided_slice %64 {offsets = [0, 64], sizes = [4, 32], strides = [1, 1]} : vector<4x96xf32> to vector<4x32xf32>
    %77 = arith.addf %76, %6 : vector<4x32xf32>
    %78 = arith.mulf %73, %77 : vector<4x32xf32>
    %79 = arith.addf %75, %78 : vector<4x32xf32>
    %80 = math.tanh %79 : vector<4x32xf32>
    %cst_26 = arith.constant 1.000000e+00 : f32
    %81 = vector.broadcast %cst_26 : f32 to vector<4x32xf32>
    %82 = arith.subf %81, %74 : vector<4x32xf32>
    %83 = arith.mulf %82, %80 : vector<4x32xf32>
    %84 = arith.mulf %74, %58 : vector<4x32xf32>
    %85 = arith.addf %83, %84 : vector<4x32xf32>
    %c2_27 = arith.constant 2 : index
    %c0_28 = arith.constant 0 : index
    %c0_29 = arith.constant 0 : index
    %86 = vector.load %arg5[%c2_27, %c0_28, %c0_29] : memref<8x4x32xf32, #tpu.memory_space<vmem>>, vector<1x4x32xf32>
    %87 = vector.shape_cast %86 : vector<1x4x32xf32> to vector<4x32xf32>
    %88 = vector.shape_cast %85 : vector<4x32xf32> to vector<1x4x32xf32>
    tpu.vector_store %arg5[%c2_27, %c0_28, %c0_29], %88 {strides = array<i32>} : memref<8x4x32xf32, #tpu.memory_space<vmem>>, vector<1x4x32xf32>,
    %c3 = arith.constant 3 : index
    %c0_30 = arith.constant 0 : index
    %c0_31 = arith.constant 0 : index
    %89 = vector.load %arg1[%c3, %c0_30, %c0_31] : memref<8x4x96xf32, #tpu.memory_space<vmem>>, vector<1x4x96xf32>
    %90 = vector.shape_cast %89 : vector<1x4x96xf32> to vector<4x96xf32>
    %cst_32 = arith.constant dense<0.000000e+00> : vector<4x96xf32>
    %91 = tpu.matmul %85, %3, %cst_32 {dimension_numbers = #tpu.dot_dimension_numbers<[1], [0], [0], [1], [0, 0, 1, 1], [], []>} : vector<4x32xf32>, vector<32x96xf32>, vector<4x96xf32> -> vector<4x96xf32>
    %92 = vector.extract_strided_slice %90 {offsets = [0, 0], sizes = [4, 64], strides = [1, 1]} : vector<4x96xf32> to vector<4x64xf32>
    %93 = vector.extract_strided_slice %91 {offsets = [0, 0], sizes = [4, 64], strides = [1, 1]} : vector<4x96xf32> to vector<4x64xf32>
    %94 = arith.addf %92, %93 : vector<4x64xf32>
    %95 = arith.negf %94 : vector<4x64xf32>
    %96 = math.exp %95 : vector<4x64xf32>
    %cst_33 = arith.constant 1.000000e+00 : f32
    %97 = vector.broadcast %cst_33 : f32 to vector<4x64xf32>
    %98 = arith.addf %97, %96 : vector<4x64xf32>
    %99 = arith.divf %97, %98 : vector<4x64xf32>
    %100 = vector.extract_strided_slice %99 {offsets = [0, 0], sizes = [4, 32], strides = [1, 1]} : vector<4x64xf32> to vector<4x32xf32>
    %101 = vector.extract_strided_slice %99 {offsets = [0, 32], sizes = [4, 32], strides = [1, 1]} : vector<4x64xf32> to vector<4x32xf32>
    %102 = vector.extract_strided_slice %90 {offsets = [0, 64], sizes = [4, 32], strides = [1, 1]} : vector<4x96xf32> to vector<4x32xf32>
    %103 = vector.extract_strided_slice %91 {offsets = [0, 64], sizes = [4, 32], strides = [1, 1]} : vector<4x96xf32> to vector<4x32xf32>
    %104 = arith.addf %103, %6 : vector<4x32xf32>
    %105 = arith.mulf %100, %104 : vector<4x32xf32>
    %106 = arith.addf %102, %105 : vector<4x32xf32>
    %107 = math.tanh %106 : vector<4x32xf32>
    %cst_34 = arith.constant 1.000000e+00 : f32
    %108 = vector.broadcast %cst_34 : f32 to vector<4x32xf32>
    %109 = arith.subf %108, %101 : vector<4x32xf32>
    %110 = arith.mulf %109, %107 : vector<4x32xf32>
    %111 = arith.mulf %101, %85 : vector<4x32xf32>
    %112 = arith.addf %110, %111 : vector<4x32xf32>
    %c3_35 = arith.constant 3 : index
    %c0_36 = arith.constant 0 : index
    %c0_37 = arith.constant 0 : index
    %113 = vector.load %arg5[%c3_35, %c0_36, %c0_37] : memref<8x4x32xf32, #tpu.memory_space<vmem>>, vector<1x4x32xf32>
    %114 = vector.shape_cast %113 : vector<1x4x32xf32> to vector<4x32xf32>
    %115 = vector.shape_cast %112 : vector<4x32xf32> to vector<1x4x32xf32>
    tpu.vector_store %arg5[%c3_35, %c0_36, %c0_37], %115 {strides = array<i32>} : memref<8x4x32xf32, #tpu.memory_space<vmem>>, vector<1x4x32xf32>,
    %c4 = arith.constant 4 : index
    %c0_38 = arith.constant 0 : index
    %c0_39 = arith.constant 0 : index
    %116 = vector.load %arg1[%c4, %c0_38, %c0_39] : memref<8x4x96xf32, #tpu.memory_space<vmem>>, vector<1x4x96xf32>
    %117 = vector.shape_cast %116 : vector<1x4x96xf32> to vector<4x96xf32>
    %cst_40 = arith.constant dense<0.000000e+00> : vector<4x96xf32>
    %118 = tpu.matmul %112, %3, %cst_40 {dimension_numbers = #tpu.dot_dimension_numbers<[1], [0], [0], [1], [0, 0, 1, 1], [], []>} : vector<4x32xf32>, vector<32x96xf32>, vector<4x96xf32> -> vector<4x96xf32>
    %119 = vector.extract_strided_slice %117 {offsets = [0, 0], sizes = [4, 64], strides = [1, 1]} : vector<4x96xf32> to vector<4x64xf32>
    %120 = vector.extract_strided_slice %118 {offsets = [0, 0], sizes = [4, 64], strides = [1, 1]} : vector<4x96xf32> to vector<4x64xf32>
    %121 = arith.addf %119, %120 : vector<4x64xf32>
    %122 = arith.negf %121 : vector<4x64xf32>
    %123 = math.exp %122 : vector<4x64xf32>
    %cst_41 = arith.constant 1.000000e+00 : f32
    %124 = vector.broadcast %cst_41 : f32 to vector<4x64xf32>
    %125 = arith.addf %124, %123 : vector<4x64xf32>
    %126 = arith.divf %124, %125 : vector<4x64xf32>
    %127 = vector.extract_strided_slice %126 {offsets = [0, 0], sizes = [4, 32], strides = [1, 1]} : vector<4x64xf32> to vector<4x32xf32>
    %128 = vector.extract_strided_slice %126 {offsets = [0, 32], sizes = [4, 32], strides = [1, 1]} : vector<4x64xf32> to vector<4x32xf32>
    %129 = vector.extract_strided_slice %117 {offsets = [0, 64], sizes = [4, 32], strides = [1, 1]} : vector<4x96xf32> to vector<4x32xf32>
    %130 = vector.extract_strided_slice %118 {offsets = [0, 64], sizes = [4, 32], strides = [1, 1]} : vector<4x96xf32> to vector<4x32xf32>
    %131 = arith.addf %130, %6 : vector<4x32xf32>
    %132 = arith.mulf %127, %131 : vector<4x32xf32>
    %133 = arith.addf %129, %132 : vector<4x32xf32>
    %134 = math.tanh %133 : vector<4x32xf32>
    %cst_42 = arith.constant 1.000000e+00 : f32
    %135 = vector.broadcast %cst_42 : f32 to vector<4x32xf32>
    %136 = arith.subf %135, %128 : vector<4x32xf32>
    %137 = arith.mulf %136, %134 : vector<4x32xf32>
    %138 = arith.mulf %128, %112 : vector<4x32xf32>
    %139 = arith.addf %137, %138 : vector<4x32xf32>
    %c4_43 = arith.constant 4 : index
    %c0_44 = arith.constant 0 : index
    %c0_45 = arith.constant 0 : index
    %140 = vector.load %arg5[%c4_43, %c0_44, %c0_45] : memref<8x4x32xf32, #tpu.memory_space<vmem>>, vector<1x4x32xf32>
    %141 = vector.shape_cast %140 : vector<1x4x32xf32> to vector<4x32xf32>
    %142 = vector.shape_cast %139 : vector<4x32xf32> to vector<1x4x32xf32>
    tpu.vector_store %arg5[%c4_43, %c0_44, %c0_45], %142 {strides = array<i32>} : memref<8x4x32xf32, #tpu.memory_space<vmem>>, vector<1x4x32xf32>,
    %c5 = arith.constant 5 : index
    %c0_46 = arith.constant 0 : index
    %c0_47 = arith.constant 0 : index
    %143 = vector.load %arg1[%c5, %c0_46, %c0_47] : memref<8x4x96xf32, #tpu.memory_space<vmem>>, vector<1x4x96xf32>
    %144 = vector.shape_cast %143 : vector<1x4x96xf32> to vector<4x96xf32>
    %cst_48 = arith.constant dense<0.000000e+00> : vector<4x96xf32>
    %145 = tpu.matmul %139, %3, %cst_48 {dimension_numbers = #tpu.dot_dimension_numbers<[1], [0], [0], [1], [0, 0, 1, 1], [], []>} : vector<4x32xf32>, vector<32x96xf32>, vector<4x96xf32> -> vector<4x96xf32>
    %146 = vector.extract_strided_slice %144 {offsets = [0, 0], sizes = [4, 64], strides = [1, 1]} : vector<4x96xf32> to vector<4x64xf32>
    %147 = vector.extract_strided_slice %145 {offsets = [0, 0], sizes = [4, 64], strides = [1, 1]} : vector<4x96xf32> to vector<4x64xf32>
    %148 = arith.addf %146, %147 : vector<4x64xf32>
    %149 = arith.negf %148 : vector<4x64xf32>
    %150 = math.exp %149 : vector<4x64xf32>
    %cst_49 = arith.constant 1.000000e+00 : f32
    %151 = vector.broadcast %cst_49 : f32 to vector<4x64xf32>
    %152 = arith.addf %151, %150 : vector<4x64xf32>
    %153 = arith.divf %151, %152 : vector<4x64xf32>
    %154 = vector.extract_strided_slice %153 {offsets = [0, 0], sizes = [4, 32], strides = [1, 1]} : vector<4x64xf32> to vector<4x32xf32>
    %155 = vector.extract_strided_slice %153 {offsets = [0, 32], sizes = [4, 32], strides = [1, 1]} : vector<4x64xf32> to vector<4x32xf32>
    %156 = vector.extract_strided_slice %144 {offsets = [0, 64], sizes = [4, 32], strides = [1, 1]} : vector<4x96xf32> to vector<4x32xf32>
    %157 = vector.extract_strided_slice %145 {offsets = [0, 64], sizes = [4, 32], strides = [1, 1]} : vector<4x96xf32> to vector<4x32xf32>
    %158 = arith.addf %157, %6 : vector<4x32xf32>
    %159 = arith.mulf %154, %158 : vector<4x32xf32>
    %160 = arith.addf %156, %159 : vector<4x32xf32>
    %161 = math.tanh %160 : vector<4x32xf32>
    %cst_50 = arith.constant 1.000000e+00 : f32
    %162 = vector.broadcast %cst_50 : f32 to vector<4x32xf32>
    %163 = arith.subf %162, %155 : vector<4x32xf32>
    %164 = arith.mulf %163, %161 : vector<4x32xf32>
    %165 = arith.mulf %155, %139 : vector<4x32xf32>
    %166 = arith.addf %164, %165 : vector<4x32xf32>
    %c5_51 = arith.constant 5 : index
    %c0_52 = arith.constant 0 : index
    %c0_53 = arith.constant 0 : index
    %167 = vector.load %arg5[%c5_51, %c0_52, %c0_53] : memref<8x4x32xf32, #tpu.memory_space<vmem>>, vector<1x4x32xf32>
    %168 = vector.shape_cast %167 : vector<1x4x32xf32> to vector<4x32xf32>
    %169 = vector.shape_cast %166 : vector<4x32xf32> to vector<1x4x32xf32>
    tpu.vector_store %arg5[%c5_51, %c0_52, %c0_53], %169 {strides = array<i32>} : memref<8x4x32xf32, #tpu.memory_space<vmem>>, vector<1x4x32xf32>,
    %c6 = arith.constant 6 : index
    %c0_54 = arith.constant 0 : index
    %c0_55 = arith.constant 0 : index
    %170 = vector.load %arg1[%c6, %c0_54, %c0_55] : memref<8x4x96xf32, #tpu.memory_space<vmem>>, vector<1x4x96xf32>
    %171 = vector.shape_cast %170 : vector<1x4x96xf32> to vector<4x96xf32>
    %cst_56 = arith.constant dense<0.000000e+00> : vector<4x96xf32>
    %172 = tpu.matmul %166, %3, %cst_56 {dimension_numbers = #tpu.dot_dimension_numbers<[1], [0], [0], [1], [0, 0, 1, 1], [], []>} : vector<4x32xf32>, vector<32x96xf32>, vector<4x96xf32> -> vector<4x96xf32>
    %173 = vector.extract_strided_slice %171 {offsets = [0, 0], sizes = [4, 64], strides = [1, 1]} : vector<4x96xf32> to vector<4x64xf32>
    %174 = vector.extract_strided_slice %172 {offsets = [0, 0], sizes = [4, 64], strides = [1, 1]} : vector<4x96xf32> to vector<4x64xf32>
    %175 = arith.addf %173, %174 : vector<4x64xf32>
    %176 = arith.negf %175 : vector<4x64xf32>
    %177 = math.exp %176 : vector<4x64xf32>
    %cst_57 = arith.constant 1.000000e+00 : f32
    %178 = vector.broadcast %cst_57 : f32 to vector<4x64xf32>
    %179 = arith.addf %178, %177 : vector<4x64xf32>
    %180 = arith.divf %178, %179 : vector<4x64xf32>
    %181 = vector.extract_strided_slice %180 {offsets = [0, 0], sizes = [4, 32], strides = [1, 1]} : vector<4x64xf32> to vector<4x32xf32>
    %182 = vector.extract_strided_slice %180 {offsets = [0, 32], sizes = [4, 32], strides = [1, 1]} : vector<4x64xf32> to vector<4x32xf32>
    %183 = vector.extract_strided_slice %171 {offsets = [0, 64], sizes = [4, 32], strides = [1, 1]} : vector<4x96xf32> to vector<4x32xf32>
    %184 = vector.extract_strided_slice %172 {offsets = [0, 64], sizes = [4, 32], strides = [1, 1]} : vector<4x96xf32> to vector<4x32xf32>
    %185 = arith.addf %184, %6 : vector<4x32xf32>
    %186 = arith.mulf %181, %185 : vector<4x32xf32>
    %187 = arith.addf %183, %186 : vector<4x32xf32>
    %188 = math.tanh %187 : vector<4x32xf32>
    %cst_58 = arith.constant 1.000000e+00 : f32
    %189 = vector.broadcast %cst_58 : f32 to vector<4x32xf32>
    %190 = arith.subf %189, %182 : vector<4x32xf32>
    %191 = arith.mulf %190, %188 : vector<4x32xf32>
    %192 = arith.mulf %182, %166 : vector<4x32xf32>
    %193 = arith.addf %191, %192 : vector<4x32xf32>
    %c6_59 = arith.constant 6 : index
    %c0_60 = arith.constant 0 : index
    %c0_61 = arith.constant 0 : index
    %194 = vector.load %arg5[%c6_59, %c0_60, %c0_61] : memref<8x4x32xf32, #tpu.memory_space<vmem>>, vector<1x4x32xf32>
    %195 = vector.shape_cast %194 : vector<1x4x32xf32> to vector<4x32xf32>
    %196 = vector.shape_cast %193 : vector<4x32xf32> to vector<1x4x32xf32>
    tpu.vector_store %arg5[%c6_59, %c0_60, %c0_61], %196 {strides = array<i32>} : memref<8x4x32xf32, #tpu.memory_space<vmem>>, vector<1x4x32xf32>,
    %c7 = arith.constant 7 : index
    %c0_62 = arith.constant 0 : index
    %c0_63 = arith.constant 0 : index
    %197 = vector.load %arg1[%c7, %c0_62, %c0_63] : memref<8x4x96xf32, #tpu.memory_space<vmem>>, vector<1x4x96xf32>
    %198 = vector.shape_cast %197 : vector<1x4x96xf32> to vector<4x96xf32>
    %cst_64 = arith.constant dense<0.000000e+00> : vector<4x96xf32>
    %199 = tpu.matmul %193, %3, %cst_64 {dimension_numbers = #tpu.dot_dimension_numbers<[1], [0], [0], [1], [0, 0, 1, 1], [], []>} : vector<4x32xf32>, vector<32x96xf32>, vector<4x96xf32> -> vector<4x96xf32>
    %200 = vector.extract_strided_slice %198 {offsets = [0, 0], sizes = [4, 64], strides = [1, 1]} : vector<4x96xf32> to vector<4x64xf32>
    %201 = vector.extract_strided_slice %199 {offsets = [0, 0], sizes = [4, 64], strides = [1, 1]} : vector<4x96xf32> to vector<4x64xf32>
    %202 = arith.addf %200, %201 : vector<4x64xf32>
    %203 = arith.negf %202 : vector<4x64xf32>
    %204 = math.exp %203 : vector<4x64xf32>
    %cst_65 = arith.constant 1.000000e+00 : f32
    %205 = vector.broadcast %cst_65 : f32 to vector<4x64xf32>
    %206 = arith.addf %205, %204 : vector<4x64xf32>
    %207 = arith.divf %205, %206 : vector<4x64xf32>
    %208 = vector.extract_strided_slice %207 {offsets = [0, 0], sizes = [4, 32], strides = [1, 1]} : vector<4x64xf32> to vector<4x32xf32>
    %209 = vector.extract_strided_slice %207 {offsets = [0, 32], sizes = [4, 32], strides = [1, 1]} : vector<4x64xf32> to vector<4x32xf32>
    %210 = vector.extract_strided_slice %198 {offsets = [0, 64], sizes = [4, 32], strides = [1, 1]} : vector<4x96xf32> to vector<4x32xf32>
    %211 = vector.extract_strided_slice %199 {offsets = [0, 64], sizes = [4, 32], strides = [1, 1]} : vector<4x96xf32> to vector<4x32xf32>
    %212 = arith.addf %211, %6 : vector<4x32xf32>
    %213 = arith.mulf %208, %212 : vector<4x32xf32>
    %214 = arith.addf %210, %213 : vector<4x32xf32>
    %215 = math.tanh %214 : vector<4x32xf32>
    %cst_66 = arith.constant 1.000000e+00 : f32
    %216 = vector.broadcast %cst_66 : f32 to vector<4x32xf32>
    %217 = arith.subf %216, %209 : vector<4x32xf32>
    %218 = arith.mulf %217, %215 : vector<4x32xf32>
    %219 = arith.mulf %209, %193 : vector<4x32xf32>
    %220 = arith.addf %218, %219 : vector<4x32xf32>
    %c7_67 = arith.constant 7 : index
    %c0_68 = arith.constant 0 : index
    %c0_69 = arith.constant 0 : index
    %221 = vector.load %arg5[%c7_67, %c0_68, %c0_69] : memref<8x4x32xf32, #tpu.memory_space<vmem>>, vector<1x4x32xf32>
    %222 = vector.shape_cast %221 : vector<1x4x32xf32> to vector<4x32xf32>
    %223 = vector.shape_cast %220 : vector<4x32xf32> to vector<1x4x32xf32>
    tpu.vector_store %arg5[%c7_67, %c0_68, %c0_69], %223 {strides = array<i32>} : memref<8x4x32xf32, #tpu.memory_space<vmem>>, vector<1x4x32xf32>,
    %c0_70 = arith.constant 0 : index
    %c0_71 = arith.constant 0 : index
    %224 = vector.load %arg6[%c0_70, %c0_71] : memref<4x32xf32, #tpu.memory_space<vmem>>, vector<4x32xf32>
    tpu.vector_store %arg6[%c0_70, %c0_71], %220 {strides = array<i32>} : memref<4x32xf32, #tpu.memory_space<vmem>>, vector<4x32xf32>,
    return
  }
  func.func @transform_0(%arg0: i32) -> (i32, i32, i32) {
    %c0_i32 = arith.constant 0 : i32
    %c0_i32_0 = arith.constant 0 : i32
    %c0_i32_1 = arith.constant 0 : i32
    return %arg0, %c0_i32, %c0_i32_0 : i32, i32, i32
  }
  func.func @transform_1(%arg0: i32) -> (i32, i32) {
    %c0_i32 = arith.constant 0 : i32
    %c0_i32_0 = arith.constant 0 : i32
    %c0_i32_1 = arith.constant 0 : i32
    return %c0_i32, %c0_i32_0 : i32, i32
  }
  func.func @transform_2(%arg0: i32) -> (i32, i32) {
    %c0_i32 = arith.constant 0 : i32
    %c0_i32_0 = arith.constant 0 : i32
    %c0_i32_1 = arith.constant 0 : i32
    return %c0_i32, %c0_i32_0 : i32, i32
  }
  func.func @transform_3(%arg0: i32) -> (i32, i32) {
    %c0_i32 = arith.constant 0 : i32
    %c0_i32_0 = arith.constant 0 : i32
    %c0_i32_1 = arith.constant 0 : i32
    return %c0_i32, %c0_i32_0 : i32, i32
  }
  func.func @transform_4(%arg0: i32) -> (i32, i32, i32) {
    %c0_i32 = arith.constant 0 : i32
    %c0_i32_0 = arith.constant 0 : i32
    %c0_i32_1 = arith.constant 0 : i32
    return %arg0, %c0_i32, %c0_i32_0 : i32, i32, i32
  }
}

</mosaic_0001>

<llo_original>
// kernel: gru_forward_pallas.1
$region0: #{gru_forward_pallas.1}
  #allocation0 [shape = 'u32[]', space=smem, size = 0x4, offset = 0x4, fixed_abs, tag = 'smem constant byte address 0x4 - core index']
  #allocation1 [shape = 'u32[144,128]{1,0:T(1,128)}', space=vmem, size = 0x12000, scoped, tag = 'internal scratch']
  #allocation2 [shape = 'f32[4,32]{1,0:T(4,128)}', space=vmem, size = 0x800, scoped, tag = 'scratch operand']
  %s0 = inlined_call_operand.vmem [shape: f32[8,4,96], index: 0, kind: input, shape index: {}]
  %s1 = inlined_call_operand.vmem [shape: f32[4,32], index: 1, kind: input, shape index: {}]
  %s2 = inlined_call_operand.vmem [shape: f32[32,96], index: 2, kind: input, shape index: {}]
  %s3 = inlined_call_operand.vmem [shape: f32[1,32], index: 3, kind: input, shape index: {}]
  %s4 = inlined_call_operand.vmem [shape: f32[8,4,32], index: 4, kind: output, shape index: {}]
  %s5 = sld [smem:[#allocation0]]
  $region30: #{gru_forward_pallas.1} parent=0
    _
  %s7 = ssub.s32 1, %s5
  %s8 = scalar_select 0, %s7, %s5
  // Predicated region
  $region2: #{gru_forward_pallas.1} parent=0 // pred_check
    _
  $region3: #{gru_forward_pallas.1} parent=0 // pred_check_branch
    %10 = sbr.rel (0) target = $region5
  $region4: #{gru_forward_pallas.1} parent=0 // pred_region
    _
  $region5: #{gru_forward_pallas.1} parent=0 // pred_fallthru
    _
  // Predicated region
  $region6: #{gru_forward_pallas.1} parent=0 // pred_check
    _
  $region7: #{gru_forward_pallas.1} parent=0 // pred_check_branch
    %12 = sbr.rel (0) target = $region9
  $region8: #{gru_forward_pallas.1} parent=0 // pred_region
    _
  $region9: #{gru_forward_pallas.1} parent=0 // pred_fallthru
    _
  // Predicated region
  $region10: #{gru_forward_pallas.1} parent=0 // pred_check
    _
  $region11: #{gru_forward_pallas.1} parent=0 // pred_check_branch
    %14 = sbr.rel (0) target = $region13
  $region12: #{gru_forward_pallas.1} parent=0 // pred_region
    _
  $region13: #{gru_forward_pallas.1} parent=0 // pred_fallthru
    _
  // Predicated region
  $region14: #{gru_forward_pallas.1} parent=0 // pred_check
    _
  $region15: #{gru_forward_pallas.1} parent=0 // pred_check_branch
    %16 = sbr.rel (0) target = $region17
  $region16: #{gru_forward_pallas.1} parent=0 // pred_region
    _
  $region17: #{gru_forward_pallas.1} parent=0 // pred_fallthru
    _
  %p17 = scmp.eq.s32.totalorder 0, 0
  // Predicated region
  $region18: #{gru_forward_pallas.1} parent=0 // pred_check
    %p18 = pneg %p17
  $region19: #{gru_forward_pallas.1} parent=0 // pred_check_branch
    %20 = sbr.rel (%p18) target = $region21
  $region20: #{gru_forward_pallas.1} parent=0 // pred_region
    %v21 = vld [vmem:[%s1] sm:$0xf]
    %vm22 = vcmask 257024
    %23 = vst.msk [vmem:[#allocation2] sm:$0xf] %vm22, %v21
  $region21: #{gru_forward_pallas.1} parent=0 // pred_fallthru
    _
  %v24 = vld [vmem:[%s2] sm:$0xff]
  %v25 = vld [vmem:[%s2 + $0x8] sm:$0xff]
  %v26 = vld [vmem:[%s2 + $0x10] sm:$0xff]
  %v27 = vld [vmem:[%s2 + $0x18] sm:$0xff]
  %v28 = vld [vmem:[%s3] sm:$0x1]
  %v30 = vlaneseq
  %v31 = vshrl.u32 %v30, 7
  %v32 = vsub.s32 0, %v31
  %v33 = vrot.slane %v28, %v32
  %v34 = vld [vmem:[#allocation2] sm:$0xf]
  %v35 = vld [vmem:[%s0] sm:$0xf]
  %vm36 = vcmask 261120
  %v38 = vsel %vm36, %v34, 0
  %40 = vmatprep.subr.mxu0 0.0
  %41 = vmatpush1.msra.mxu0 0.0
  %42 = vmatprep.subr.mxu0 0.0
  %43 = vmatpush1.msra.mxu0 0.0
  %44 = vmatprep.subr.mxu0 0.0
  %45 = vmatpush1.msra.mxu0 0.0
  %46 = vmatprep.subr.mxu0 0.0
  %47 = vmatpush1.msra.mxu0 0.0
  %48 = vmatprep.subr.mxu0 0.0
  %49 = vmatpush1.msra.mxu0 0.0
  %50 = vmatprep.subr.mxu0 0.0
  %51 = vmatpush1.msra.mxu0 0.0
  %52 = vmatprep.subr.mxu0 0.0
  %53 = vmatpush1.msra.mxu0 0.0
  %54 = vmatprep.subr.mxu0 0.0
  %55 = vmatpush1.msra.mxu0 0.0
  %56 = vmatprep.subr.mxu0 0.0
  %57 = vmatpush1.msra.mxu0 0.0
  %58 = vmatprep.subr.mxu0 0.0
  %59 = vmatpush1.msra.mxu0 0.0
  %60 = vmatprep.subr.mxu0 0.0
  %61 = vmatpush1.msra.mxu0 0.0
  %62 = vmatprep.subr.mxu0 0.0
  %63 = vmatpush1.msra.mxu0 0.0
  %64 = vmatprep.subr.mxu0 0.0
  %65 = vmatpush1.msra.mxu0 %v27
  %66 = vmatprep.subr.mxu0 0.0
  %67 = vmatpush1.msra.mxu0 %v26
  %68 = vmatprep.subr.mxu0 0.0
  %69 = vmatpush1.msra.mxu0 %v25
  %70 = vmatprep.subr.mxu0 0.0
  %71 = vmatpush1.msra.mxu0 %v24
  %72 = vmatprep.subr.mxu0 0.0
  %73 = vmatpush2.msra.mxu0 0.0
  %74 = vmatprep.subr.mxu0 0.0
  %75 = vmatpush2.msra.mxu0 0.0
  %76 = vmatprep.subr.mxu0 0.0
  %77 = vmatpush2.msra.mxu0 0.0
  %78 = vmatprep.subr.mxu0 0.0
  %79 = vmatpush2.msra.mxu0 0.0
  %80 = vmatprep.subr.mxu0 0.0
  %81 = vmatpush2.msra.mxu0 0.0
  %82 = vmatprep.subr.mxu0 0.0
  %83 = vmatpush2.msra.mxu0 0.0
  %84 = vmatprep.subr.mxu0 0.0
  %85 = vmatpush2.msra.mxu0 0.0
  %86 = vmatprep.subr.mxu0 0.0
  %87 = vmatpush2.msra.mxu0 0.0
  %88 = vmatprep.subr.mxu0 0.0
  %89 = vmatpush2.msra.mxu0 0.0
  %90 = vmatprep.subr.mxu0 0.0
  %91 = vmatpush2.msra.mxu0 0.0
  %92 = vmatprep.subr.mxu0 0.0
  %93 = vmatpush2.msra.mxu0 0.0
  %94 = vmatprep.subr.mxu0 0.0
  %95 = vmatpush2.msra.mxu0 0.0
  %96 = vmatprep.subr.mxu0 0.0
  %97 = vmatpush2.msra.mxu0 0.0
  %98 = vmatprep.subr.mxu0 0.0
  %99 = vmatpush2.msra.mxu0 0.0
  %100 = vmatprep.subr.mxu0 0.0
  %101 = vmatpush2.msra.mxu0 0.0
  %102 = vmatprep.subr.mxu0 0.0
  %103 = vmatpush2.msra.mxu0 0.0
  %104 = vmatprep.mubr.f32.mxu0 0.0
  %105 = vmatmul.mubr.f32.gmra.mxu0 %v38
  %v106 = vpop.f32.mrf.mxu0
  %v107 = vadd.f32 0.0, %v106
  %v108 = vpop.f32.mrf.mxu0
  %109 = vdwg.mxu0
  %v110 = vadd.f32 %v35, %v107
  %v111 = vxor.u32 %v110, 2147483648
  %v112 = vmul.f32 %v111, 1.442695
  %v113 = vpow.pop %v112
  %v114 = vadd.f32 %v113, 1.0
  %v115 = vrcp.pop %v114
  %v116 = vmul.f32 1.0, %v115
  %117 = vrot.lane.b32.xlu0 %v33, 64
  %v118 = vpop.permute.xlu0 %117
  %v120 = vadd.f32 %v107, %v118
  %122 = vrot.lane.b32.xlu0 %v120, 64
  %v123 = vpop.permute.xlu0 %122
  %v125 = vmul.f32 %v116, %v123
  %127 = vrot.lane.b32.xlu0 %v125, 64
  %v128 = vpop.permute.xlu0 %127
  %v130 = vadd.f32 %v35, %v128
  %v131 = vtanh.pop %v130
  %v132 = vsub.f32 1.0, %v116
  %134 = vrot.lane.b32.xlu0 %v131, 96
  %v135 = vpop.permute.xlu0 %134
  %v137 = vmul.f32 %v132, %v135
  %138 = vrot.lane.b32.xlu0 %v34, 32
  %v139 = vpop.permute.xlu0 %138
  %v141 = vmul.f32 %v116, %v139
  %v142 = vadd.f32 %v137, %v141
  %144 = vrot.lane.b32.xlu0 %v142, 96
  %v145 = vpop.permute.xlu0 %144
  %vm147 = vcmask 257024
  %148 = vst.msk [vmem:[%s4] sm:$0xf] %vm147, %v145
  %s149 = scalar_lea.vmem %s0, 4
  %v150 = vld [vmem:[%s149] sm:$0xf]
  %v151 = vsel %vm36, %v145, 0
  %153 = vmatprep.subr.mxu0 0.0
  %154 = vmatpush1.msra.mxu0 0.0
  %155 = vmatprep.subr.mxu0 0.0
  %156 = vmatpush1.msra.mxu0 0.0
  %157 = vmatprep.subr.mxu0 0.0
  %158 = vmatpush1.msra.mxu0 0.0
  %159 = vmatprep.subr.mxu0 0.0
  %160 = vmatpush1.msra.mxu0 0.0
  %161 = vmatprep.subr.mxu0 0.0
  %162 = vmatpush1.msra.mxu0 0.0
  %163 = vmatprep.subr.mxu0 0.0
  %164 = vmatpush1.msra.mxu0 0.0
  %165 = vmatprep.subr.mxu0 0.0
  %166 = vmatpush1.msra.mxu0 0.0
  %167 = vmatprep.subr.mxu0 0.0
  %168 = vmatpush1.msra.mxu0 0.0
  %169 = vmatprep.subr.mxu0 0.0
  %170 = vmatpush1.msra.mxu0 0.0
  %171 = vmatprep.subr.mxu0 0.0
  %172 = vmatpush1.msra.mxu0 0.0
  %173 = vmatprep.subr.mxu0 0.0
  %174 = vmatpush1.msra.mxu0 0.0
  %175 = vmatprep.subr.mxu0 0.0
  %176 = vmatpush1.msra.mxu0 0.0
  %177 = vmatprep.subr.mxu0 0.0
  %178 = vmatpush1.msra.mxu0 %v27
  %179 = vmatprep.subr.mxu0 0.0
  %180 = vmatpush1.msra.mxu0 %v26
  %181 = vmatprep.subr.mxu0 0.0
  %182 = vmatpush1.msra.mxu0 %v25
  %183 = vmatprep.subr.mxu0 0.0
  %184 = vmatpush1.msra.mxu0 %v24
  %185 = vmatprep.subr.mxu0 0.0
  %186 = vmatpush2.msra.mxu0 0.0
  %187 = vmatprep.subr.mxu0 0.0
  %188 = vmatpush2.msra.mxu0 0.0
  %189 = vmatprep.subr.mxu0 0.0
  %190 = vmatpush2.msra.mxu0 0.0
  %191 = vmatprep.subr.mxu0 0.0
  %192 = vmatpush2.msra.mxu0 0.0
  %193 = vmatprep.subr.mxu0 0.0
  %194 = vmatpush2.msra.mxu0 0.0
  %195 = vmatprep.subr.mxu0 0.0
  %196 = vmatpush2.msra.mxu0 0.0
  %197 = vmatprep.subr.mxu0 0.0
  %198 = vmatpush2.msra.mxu0 0.0
  %199 = vmatprep.subr.mxu0 0.0
  %200 = vmatpush2.msra.mxu0 0.0
  %201 = vmatprep.subr.mxu0 0.0
  %202 = vmatpush2.msra.mxu0 0.0
  %203 = vmatprep.subr.mxu0 0.0
  %204 = vmatpush2.msra.mxu0 0.0
  %205 = vmatprep.subr.mxu0 0.0
  %206 = vmatpush2.msra.mxu0 0.0
  %207 = vmatprep.subr.mxu0 0.0
  %208 = vmatpush2.msra.mxu0 0.0
  %209 = vmatprep.subr.mxu0 0.0
  %210 = vmatpush2.msra.mxu0 0.0
  %211 = vmatprep.subr.mxu0 0.0
  %212 = vmatpush2.msra.mxu0 0.0
  %213 = vmatprep.subr.mxu0 0.0
  %214 = vmatpush2.msra.mxu0 0.0
  %215 = vmatprep.subr.mxu0 0.0
  %216 = vmatpush2.msra.mxu0 0.0
  %217 = vmatprep.mubr.f32.mxu0 0.0
  %218 = vmatmul.mubr.f32.gmra.mxu0 %v151
  %v219 = vpop.f32.mrf.mxu0
  %v220 = vadd.f32 0.0, %v219
  %v221 = vpop.f32.mrf.mxu0
  %222 = vdwg.mxu0
  %v223 = vadd.f32 %v150, %v220
  %v224 = vxor.u32 %v223, 2147483648
  %v225 = vmul.f32 %v224, 1.442695
  %v226 = vpow.pop %v225
  %v227 = vadd.f32 %v226, 1.0
  %v228 = vrcp.pop %v227
  %v229 = vmul.f32 1.0, %v228
  %v230 = vadd.f32 %v220, %v118
  %232 = vrot.lane.b32.xlu0 %v230, 64
  %v233 = vpop.permute.xlu0 %232
  %v235 = vmul.f32 %v229, %v233
  %237 = vrot.lane.b32.xlu0 %v235, 64
  %v238 = vpop.permute.xlu0 %237
  %v240 = vadd.f32 %v150, %v238
  %v241 = vtanh.pop %v240
  %v242 = vsub.f32 1.0, %v229
  %244 = vrot.lane.b32.xlu0 %v241, 96
  %v245 = vpop.permute.xlu0 %244
  %v247 = vmul.f32 %v242, %v245
  %v248 = vmul.f32 %v229, %v142
  %v249 = vadd.f32 %v247, %v248
  %251 = vrot.lane.b32.xlu0 %v249, 96
  %v252 = vpop.permute.xlu0 %251
  %s254 = scalar_lea.vmem %s4, 4
  %255 = vst.msk [vmem:[%s254] sm:$0xf] %vm147, %v252
  %s256 = scalar_lea.vmem %s0, 8
  %v257 = vld [vmem:[%s256] sm:$0xf]
  %v258 = vsel %vm36, %v252, 0
  %260 = vmatprep.subr.mxu0 0.0
  %261 = vmatpush1.msra.mxu0 0.0
  %262 = vmatprep.subr.mxu0 0.0
  %263 = vmatpush1.msra.mxu0 0.0
  %264 = vmatprep.subr.mxu0 0.0
  %265 = vmatpush1.msra.mxu0 0.0
  %266 = vmatprep.subr.mxu0 0.0
  %267 = vmatpush1.msra.mxu0 0.0
  %268 = vmatprep.subr.mxu0 0.0
  %269 = vmatpush1.msra.mxu0 0.0
  %270 = vmatprep.subr.mxu0 0.0
  %271 = vmatpush1.msra.mxu0 0.0
  %272 = vmatprep.subr.mxu0 0.0
  %273 = vmatpush1.msra.mxu0 0.0
  %274 = vmatprep.subr.mxu0 0.0
  %275 = vmatpush1.msra.mxu0 0.0
  %276 = vmatprep.subr.mxu0 0.0
  %277 = vmatpush1.msra.mxu0 0.0
  %278 = vmatprep.subr.mxu0 0.0
  %279 = vmatpush1.msra.mxu0 0.0
  %280 = vmatprep.subr.mxu0 0.0
  %281 = vmatpush1.msra.mxu0 0.0
  %282 = vmatprep.subr.mxu0 0.0
  %283 = vmatpush1.msra.mxu0 0.0
  %284 = vmatprep.subr.mxu0 0.0
  %285 = vmatpush1.msra.mxu0 %v27
  %286 = vmatprep.subr.mxu0 0.0
  %287 = vmatpush1.msra.mxu0 %v26
  %288 = vmatprep.subr.mxu0 0.0
  %289 = vmatpush1.msra.mxu0 %v25
  %290 = vmatprep.subr.mxu0 0.0
  %291 = vmatpush1.msra.mxu0 %v24
  %292 = vmatprep.subr.mxu0 0.0
  %293 = vmatpush2.msra.mxu0 0.0
  %294 = vmatprep.subr.mxu0 0.0
  %295 = vmatpush2.msra.mxu0 0.0
  %296 = vmatprep.subr.mxu0 0.0
  %297 = vmatpush2.msra.mxu0 0.0
  %298 = vmatprep.subr.mxu0 0.0
  %299 = vmatpush2.msra.mxu0 0.0
  %300 = vmatprep.subr.mxu0 0.0
  %301 = vmatpush2.msra.mxu0 0.0
  %302 = vmatprep.subr.mxu0 0.0
  %303 = vmatpush2.msra.mxu0 0.0
  %304 = vmatprep.subr.mxu0 0.0
  %305 = vmatpush2.msra.mxu0 0.0
  %306 = vmatprep.subr.mxu0 0.0
  %307 = vmatpush2.msra.mxu0 0.0
  %308 = vmatprep.subr.mxu0 0.0
  %309 = vmatpush2.msra.mxu0 0.0
  %310 = vmatprep.subr.mxu0 0.0
  %311 = vmatpush2.msra.mxu0 0.0
  %312 = vmatprep.subr.mxu0 0.0
  %313 = vmatpush2.msra.mxu0 0.0
  %314 = vmatprep.subr.mxu0 0.0
  %315 = vmatpush2.msra.mxu0 0.0
  %316 = vmatprep.subr.mxu0 0.0
  %317 = vmatpush2.msra.mxu0 0.0
  %318 = vmatprep.subr.mxu0 0.0
  %319 = vmatpush2.msra.mxu0 0.0
  %320 = vmatprep.subr.mxu0 0.0
  %321 = vmatpush2.msra.mxu0 0.0
  %322 = vmatprep.subr.mxu0 0.0
  %323 = vmatpush2.msra.mxu0 0.0
  %324 = vmatprep.mubr.f32.mxu0 0.0
  %325 = vmatmul.mubr.f32.gmra.mxu0 %v258
  %v326 = vpop.f32.mrf.mxu0
  %v327 = vadd.f32 0.0, %v326
  %v328 = vpop.f32.mrf.mxu0
  %329 = vdwg.mxu0
  %v330 = vadd.f32 %v257, %v327
  %v331 = vxor.u32 %v330, 2147483648
  %v332 = vmul.f32 %v331, 1.442695
  %v333 = vpow.pop %v332
  %v334 = vadd.f32 %v333, 1.0
  %v335 = vrcp.pop %v334
  %v336 = vmul.f32 1.0, %v335
  %v337 = vadd.f32 %v327, %v118
  %339 = vrot.lane.b32.xlu0 %v337, 64
  %v340 = vpop.permute.xlu0 %339
  %v342 = vmul.f32 %v336, %v340
  %344 = vrot.lane.b32.xlu0 %v342, 64
  %v345 = vpop.permute.xlu0 %344
  %v347 = vadd.f32 %v257, %v345
  %v348 = vtanh.pop %v347
  %v349 = vsub.f32 1.0, %v336
  %351 = vrot.lane.b32.xlu0 %v348, 96
  %v352 = vpop.permute.xlu0 %351
  %v354 = vmul.f32 %v349, %v352
  %v355 = vmul.f32 %v336, %v249
  %v356 = vadd.f32 %v354, %v355
  %358 = vrot.lane.b32.xlu0 %v356, 96
  %v359 = vpop.permute.xlu0 %358
  %s361 = scalar_lea.vmem %s4, 8
  %362 = vst.msk [vmem:[%s361] sm:$0xf] %vm147, %v359
  %s363 = scalar_lea.vmem %s0, 12
  %v364 = vld [vmem:[%s363] sm:$0xf]
  %v365 = vsel %vm36, %v359, 0
  %367 = vmatprep.subr.mxu0 0.0
  %368 = vmatpush1.msra.mxu0 0.0
  %369 = vmatprep.subr.mxu0 0.0
  %370 = vmatpush1.msra.mxu0 0.0
  %371 = vmatprep.subr.mxu0 0.0
  %372 = vmatpush1.msra.mxu0 0.0
  %373 = vmatprep.subr.mxu0 0.0
  %374 = vmatpush1.msra.mxu0 0.0
  %375 = vmatprep.subr.mxu0 0.0
  %376 = vmatpush1.msra.mxu0 0.0
  %377 = vmatprep.subr.mxu0 0.0
  %378 = vmatpush1.msra.mxu0 0.0
  %379 = vmatprep.subr.mxu0 0.0
  %380 = vmatpush1.msra.mxu0 0.0
  %381 = vmatprep.subr.mxu0 0.0
  %382 = vmatpush1.msra.mxu0 0.0
  %383 = vmatprep.subr.mxu0 0.0
  %384 = vmatpush1.msra.mxu0 0.0
  %385 = vmatprep.subr.mxu0 0.0
  %386 = vmatpush1.msra.mxu0 0.0
  %387 = vmatprep.subr.mxu0 0.0
  %388 = vmatpush1.msra.mxu0 0.0
  %389 = vmatprep.subr.mxu0 0.0
  %390 = vmatpush1.msra.mxu0 0.0
  %391 = vmatprep.subr.mxu0 0.0
  %392 = vmatpush1.msra.mxu0 %v27
  %393 = vmatprep.subr.mxu0 0.0
  %394 = vmatpush1.msra.mxu0 %v26
  %395 = vmatprep.subr.mxu0 0.0
  %396 = vmatpush1.msra.mxu0 %v25
  %397 = vmatprep.subr.mxu0 0.0
  %398 = vmatpush1.msra.mxu0 %v24
  %399 = vmatprep.subr.mxu0 0.0
  %400 = vmatpush2.msra.mxu0 0.0
  %401 = vmatprep.subr.mxu0 0.0
  %402 = vmatpush2.msra.mxu0 0.0
  %403 = vmatprep.subr.mxu0 0.0
  %404 = vmatpush2.msra.mxu0 0.0
  %405 = vmatprep.subr.mxu0 0.0
  %406 = vmatpush2.msra.mxu0 0.0
  %407 = vmatprep.subr.mxu0 0.0
  %408 = vmatpush2.msra.mxu0 0.0
  %409 = vmatprep.subr.mxu0 0.0
  %410 = vmatpush2.msra.mxu0 0.0
  %411 = vmatprep.subr.mxu0 0.0
  %412 = vmatpush2.msra.mxu0 0.0
  %413 = vmatprep.subr.mxu0 0.0
  %414 = vmatpush2.msra.mxu0 0.0
  %415 = vmatprep.subr.mxu0 0.0
  %416 = vmatpush2.msra.mxu0 0.0
  %417 = vmatprep.subr.mxu0 0.0
  %418 = vmatpush2.msra.mxu0 0.0
  %419 = vmatprep.subr.mxu0 0.0
  %420 = vmatpush2.msra.mxu0 0.0
  %421 = vmatprep.subr.mxu0 0.0
  %422 = vmatpush2.msra.mxu0 0.0
  %423 = vmatprep.subr.mxu0 0.0
  %424 = vmatpush2.msra.mxu0 0.0
  %425 = vmatprep.subr.mxu0 0.0
  %426 = vmatpush2.msra.mxu0 0.0
  %427 = vmatprep.subr.mxu0 0.0
  %428 = vmatpush2.msra.mxu0 0.0
  %429 = vmatprep.subr.mxu0 0.0
  %430 = vmatpush2.msra.mxu0 0.0
  %431 = vmatprep.mubr.f32.mxu0 0.0
  %432 = vmatmul.mubr.f32.gmra.mxu0 %v365
  %v433 = vpop.f32.mrf.mxu0
  %v434 = vadd.f32 0.0, %v433
  %v435 = vpop.f32.mrf.mxu0
  %436 = vdwg.mxu0
  %v437 = vadd.f32 %v364, %v434
  %v438 = vxor.u32 %v437, 2147483648
  %v439 = vmul.f32 %v438, 1.442695
  %v440 = vpow.pop %v439
  %v441 = vadd.f32 %v440, 1.0
  %v442 = vrcp.pop %v441
  %v443 = vmul.f32 1.0, %v442
  %v444 = vadd.f32 %v434, %v118
  %446 = vrot.lane.b32.xlu0 %v444, 64
  %v447 = vpop.permute.xlu0 %446
  %v449 = vmul.f32 %v443, %v447
  %451 = vrot.lane.b32.xlu0 %v449, 64
  %v452 = vpop.permute.xlu0 %451
  %v454 = vadd.f32 %v364, %v452
  %v455 = vtanh.pop %v454
  %v456 = vsub.f32 1.0, %v443
  %458 = vrot.lane.b32.xlu0 %v455, 96
  %v459 = vpop.permute.xlu0 %458
  %v461 = vmul.f32 %v456, %v459
  %v462 = vmul.f32 %v443, %v356
  %v463 = vadd.f32 %v461, %v462
  %465 = vrot.lane.b32.xlu0 %v463, 96
  %v466 = vpop.permute.xlu0 %465
  %s468 = scalar_lea.vmem %s4, 12
  %469 = vst.msk [vmem:[%s468] sm:$0xf] %vm147, %v466
  %s470 = scalar_lea.vmem %s0, 16
  %v471 = vld [vmem:[%s470] sm:$0xf]
  %v472 = vsel %vm36, %v466, 0
  %474 = vmatprep.subr.mxu0 0.0
  %475 = vmatpush1.msra.mxu0 0.0
  %476 = vmatprep.subr.mxu0 0.0
  %477 = vmatpush1.msra.mxu0 0.0
  %478 = vmatprep.subr.mxu0 0.0
  %479 = vmatpush1.msra.mxu0 0.0
  %480 = vmatprep.subr.mxu0 0.0
  %481 = vmatpush1.msra.mxu0 0.0
  %482 = vmatprep.subr.mxu0 0.0
  %483 = vmatpush1.msra.mxu0 0.0
  %484 = vmatprep.subr.mxu0 0.0
  %485 = vmatpush1.msra.mxu0 0.0
  %486 = vmatprep.subr.mxu0 0.0
  %487 = vmatpush1.msra.mxu0 0.0
  %488 = vmatprep.subr.mxu0 0.0
  %489 = vmatpush1.msra.mxu0 0.0
  %490 = vmatprep.subr.mxu0 0.0
  %491 = vmatpush1.msra.mxu0 0.0
  %492 = vmatprep.subr.mxu0 0.0
  %493 = vmatpush1.msra.mxu0 0.0
  %494 = vmatprep.subr.mxu0 0.0
  %495 = vmatpush1.msra.mxu0 0.0
  %496 = vmatprep.subr.mxu0 0.0
  %497 = vmatpush1.msra.mxu0 0.0
  %498 = vmatprep.subr.mxu0 0.0
  %499 = vmatpush1.msra.mxu0 %v27
  %500 = vmatprep.subr.mxu0 0.0
  %501 = vmatpush1.msra.mxu0 %v26
  %502 = vmatprep.subr.mxu0 0.0
  %503 = vmatpush1.msra.mxu0 %v25
  %504 = vmatprep.subr.mxu0 0.0
  %505 = vmatpush1.msra.mxu0 %v24
  %506 = vmatprep.subr.mxu0 0.0
  %507 = vmatpush2.msra.mxu0 0.0
  %508 = vmatprep.subr.mxu0 0.0
  %509 = vmatpush2.msra.mxu0 0.0
  %510 = vmatprep.subr.mxu0 0.0
  %511 = vmatpush2.msra.mxu0 0.0
  %512 = vmatprep.subr.mxu0 0.0
  %513 = vmatpush2.msra.mxu0 0.0
  %514 = vmatprep.subr.mxu0 0.0
  %515 = vmatpush2.msra.mxu0 0.0
  %516 = vmatprep.subr.mxu0 0.0
  %517 = vmatpush2.msra.mxu0 0.0
  %518 = vmatprep.subr.mxu0 0.0
  %519 = vmatpush2.msra.mxu0 0.0
  %520 = vmatprep.subr.mxu0 0.0
  %521 = vmatpush2.msra.mxu0 0.0
  %522 = vmatprep.subr.mxu0 0.0
  %523 = vmatpush2.msra.mxu0 0.0
  %524 = vmatprep.subr.mxu0 0.0
  %525 = vmatpush2.msra.mxu0 0.0
  %526 = vmatprep.subr.mxu0 0.0
  %527 = vmatpush2.msra.mxu0 0.0
  %528 = vmatprep.subr.mxu0 0.0
  %529 = vmatpush2.msra.mxu0 0.0
  %530 = vmatprep.subr.mxu0 0.0
  %531 = vmatpush2.msra.mxu0 0.0
  %532 = vmatprep.subr.mxu0 0.0
  %533 = vmatpush2.msra.mxu0 0.0
  %534 = vmatprep.subr.mxu0 0.0
  %535 = vmatpush2.msra.mxu0 0.0
  %536 = vmatprep.subr.mxu0 0.0
  %537 = vmatpush2.msra.mxu0 0.0
  %538 = vmatprep.mubr.f32.mxu0 0.0
  %539 = vmatmul.mubr.f32.gmra.mxu0 %v472
  %v540 = vpop.f32.mrf.mxu0
  %v541 = vadd.f32 0.0, %v540
  %v542 = vpop.f32.mrf.mxu0
  %543 = vdwg.mxu0
  %v544 = vadd.f32 %v471, %v541
  %v545 = vxor.u32 %v544, 2147483648
  %v546 = vmul.f32 %v545, 1.442695
  %v547 = vpow.pop %v546
  %v548 = vadd.f32 %v547, 1.0
  %v549 = vrcp.pop %v548
  %v550 = vmul.f32 1.0, %v549
  %v551 = vadd.f32 %v541, %v118
  %553 = vrot.lane.b32.xlu0 %v551, 64
  %v554 = vpop.permute.xlu0 %553
  %v556 = vmul.f32 %v550, %v554
  %558 = vrot.lane.b32.xlu0 %v556, 64
  %v559 = vpop.permute.xlu0 %558
  %v561 = vadd.f32 %v471, %v559
  %v562 = vtanh.pop %v561
  %v563 = vsub.f32 1.0, %v550
  %565 = vrot.lane.b32.xlu0 %v562, 96
  %v566 = vpop.permute.xlu0 %565
  %v568 = vmul.f32 %v563, %v566
  %v569 = vmul.f32 %v550, %v463
  %v570 = vadd.f32 %v568, %v569
  %572 = vrot.lane.b32.xlu0 %v570, 96
  %v573 = vpop.permute.xlu0 %572
  %s575 = scalar_lea.vmem %s4, 16
  %576 = vst.msk [vmem:[%s575] sm:$0xf] %vm147, %v573
  %s577 = scalar_lea.vmem %s0, 20
  %v578 = vld [vmem:[%s577] sm:$0xf]
  %v579 = vsel %vm36, %v573, 0
  %581 = vmatprep.subr.mxu0 0.0
  %582 = vmatpush1.msra.mxu0 0.0
  %583 = vmatprep.subr.mxu0 0.0
  %584 = vmatpush1.msra.mxu0 0.0
  %585 = vmatprep.subr.mxu0 0.0
  %586 = vmatpush1.msra.mxu0 0.0
  %587 = vmatprep.subr.mxu0 0.0
  %588 = vmatpush1.msra.mxu0 0.0
  %589 = vmatprep.subr.mxu0 0.0
  %590 = vmatpush1.msra.mxu0 0.0
  %591 = vmatprep.subr.mxu0 0.0
  %592 = vmatpush1.msra.mxu0 0.0
  %593 = vmatprep.subr.mxu0 0.0
  %594 = vmatpush1.msra.mxu0 0.0
  %595 = vmatprep.subr.mxu0 0.0
  %596 = vmatpush1.msra.mxu0 0.0
  %597 = vmatprep.subr.mxu0 0.0
  %598 = vmatpush1.msra.mxu0 0.0
  %599 = vmatprep.subr.mxu0 0.0
  %600 = vmatpush1.msra.mxu0 0.0
  %601 = vmatprep.subr.mxu0 0.0
  %602 = vmatpush1.msra.mxu0 0.0
  %603 = vmatprep.subr.mxu0 0.0
  %604 = vmatpush1.msra.mxu0 0.0
  %605 = vmatprep.subr.mxu0 0.0
  %606 = vmatpush1.msra.mxu0 %v27
  %607 = vmatprep.subr.mxu0 0.0
  %608 = vmatpush1.msra.mxu0 %v26
  %609 = vmatprep.subr.mxu0 0.0
  %610 = vmatpush1.msra.mxu0 %v25
  %611 = vmatprep.subr.mxu0 0.0
  %612 = vmatpush1.msra.mxu0 %v24
  %613 = vmatprep.subr.mxu0 0.0
  %614 = vmatpush2.msra.mxu0 0.0
  %615 = vmatprep.subr.mxu0 0.0
  %616 = vmatpush2.msra.mxu0 0.0
  %617 = vmatprep.subr.mxu0 0.0
  %618 = vmatpush2.msra.mxu0 0.0
  %619 = vmatprep.subr.mxu0 0.0
  %620 = vmatpush2.msra.mxu0 0.0
  %621 = vmatprep.subr.mxu0 0.0
  %622 = vmatpush2.msra.mxu0 0.0
  %623 = vmatprep.subr.mxu0 0.0
  %624 = vmatpush2.msra.mxu0 0.0
  %625 = vmatprep.subr.mxu0 0.0
  %626 = vmatpush2.msra.mxu0 0.0
  %627 = vmatprep.subr.mxu0 0.0
  %628 = vmatpush2.msra.mxu0 0.0
  %629 = vmatprep.subr.mxu0 0.0
  %630 = vmatpush2.msra.mxu0 0.0
  %631 = vmatprep.subr.mxu0 0.0
  %632 = vmatpush2.msra.mxu0 0.0
  %633 = vmatprep.subr.mxu0 0.0
  %634 = vmatpush2.msra.mxu0 0.0
  %635 = vmatprep.subr.mxu0 0.0
  %636 = vmatpush2.msra.mxu0 0.0
  %637 = vmatprep.subr.mxu0 0.0
  %638 = vmatpush2.msra.mxu0 0.0
  %639 = vmatprep.subr.mxu0 0.0
  %640 = vmatpush2.msra.mxu0 0.0
  %641 = vmatprep.subr.mxu0 0.0
  %642 = vmatpush2.msra.mxu0 0.0
  %643 = vmatprep.subr.mxu0 0.0
  %644 = vmatpush2.msra.mxu0 0.0
  %645 = vmatprep.mubr.f32.mxu0 0.0
  %646 = vmatmul.mubr.f32.gmra.mxu0 %v579
  %v647 = vpop.f32.mrf.mxu0
  %v648 = vadd.f32 0.0, %v647
  %v649 = vpop.f32.mrf.mxu0
  %650 = vdwg.mxu0
  %v651 = vadd.f32 %v578, %v648
  %v652 = vxor.u32 %v651, 2147483648
  %v653 = vmul.f32 %v652, 1.442695
  %v654 = vpow.pop %v653
  %v655 = vadd.f32 %v654, 1.0
  %v656 = vrcp.pop %v655
  %v657 = vmul.f32 1.0, %v656
  %v658 = vadd.f32 %v648, %v118
  %660 = vrot.lane.b32.xlu0 %v658, 64
  %v661 = vpop.permute.xlu0 %660
  %v663 = vmul.f32 %v657, %v661
  %665 = vrot.lane.b32.xlu0 %v663, 64
  %v666 = vpop.permute.xlu0 %665
  %v668 = vadd.f32 %v578, %v666
  %v669 = vtanh.pop %v668
  %v670 = vsub.f32 1.0, %v657
  %672 = vrot.lane.b32.xlu0 %v669, 96
  %v673 = vpop.permute.xlu0 %672
  %v675 = vmul.f32 %v670, %v673
  %v676 = vmul.f32 %v657, %v570
  %v677 = vadd.f32 %v675, %v676
  %679 = vrot.lane.b32.xlu0 %v677, 96
  %v680 = vpop.permute.xlu0 %679
  %s682 = scalar_lea.vmem %s4, 20
  %683 = vst.msk [vmem:[%s682] sm:$0xf] %vm147, %v680
  %s684 = scalar_lea.vmem %s0, 24
  %v685 = vld [vmem:[%s684] sm:$0xf]
  %v686 = vsel %vm36, %v680, 0
  %688 = vmatprep.subr.mxu0 0.0
  %689 = vmatpush1.msra.mxu0 0.0
  %690 = vmatprep.subr.mxu0 0.0
  %691 = vmatpush1.msra.mxu0 0.0
  %692 = vmatprep.subr.mxu0 0.0
  %693 = vmatpush1.msra.mxu0 0.0
  %694 = vmatprep.subr.mxu0 0.0
  %695 = vmatpush1.msra.mxu0 0.0
  %696 = vmatprep.subr.mxu0 0.0
  %697 = vmatpush1.msra.mxu0 0.0
  %698 = vmatprep.subr.mxu0 0.0
  %699 = vmatpush1.msra.mxu0 0.0
  %700 = vmatprep.subr.mxu0 0.0
  %701 = vmatpush1.msra.mxu0 0.0
  %702 = vmatprep.subr.mxu0 0.0
  %703 = vmatpush1.msra.mxu0 0.0
  %704 = vmatprep.subr.mxu0 0.0
  %705 = vmatpush1.msra.mxu0 0.0
  %706 = vmatprep.subr.mxu0 0.0
  %707 = vmatpush1.msra.mxu0 0.0
  %708 = vmatprep.subr.mxu0 0.0
  %709 = vmatpush1.msra.mxu0 0.0
  %710 = vmatprep.subr.mxu0 0.0
  %711 = vmatpush1.msra.mxu0 0.0
  %712 = vmatprep.subr.mxu0 0.0
  %713 = vmatpush1.msra.mxu0 %v27
  %714 = vmatprep.subr.mxu0 0.0
  %715 = vmatpush1.msra.mxu0 %v26
  %716 = vmatprep.subr.mxu0 0.0
  %717 = vmatpush1.msra.mxu0 %v25
  %718 = vmatprep.subr.mxu0 0.0
  %719 = vmatpush1.msra.mxu0 %v24
  %720 = vmatprep.subr.mxu0 0.0
  %721 = vmatpush2.msra.mxu0 0.0
  %722 = vmatprep.subr.mxu0 0.0
  %723 = vmatpush2.msra.mxu0 0.0
  %724 = vmatprep.subr.mxu0 0.0
  %725 = vmatpush2.msra.mxu0 0.0
  %726 = vmatprep.subr.mxu0 0.0
  %727 = vmatpush2.msra.mxu0 0.0
  %728 = vmatprep.subr.mxu0 0.0
  %729 = vmatpush2.msra.mxu0 0.0
  %730 = vmatprep.subr.mxu0 0.0
  %731 = vmatpush2.msra.mxu0 0.0
  %732 = vmatprep.subr.mxu0 0.0
  %733 = vmatpush2.msra.mxu0 0.0
  %734 = vmatprep.subr.mxu0 0.0
  %735 = vmatpush2.msra.mxu0 0.0
  %736 = vmatprep.subr.mxu0 0.0
  %737 = vmatpush2.msra.mxu0 0.0
  %738 = vmatprep.subr.mxu0 0.0
  %739 = vmatpush2.msra.mxu0 0.0
  %740 = vmatprep.subr.mxu0 0.0
  %741 = vmatpush2.msra.mxu0 0.0
  %742 = vmatprep.subr.mxu0 0.0
  %743 = vmatpush2.msra.mxu0 0.0
  %744 = vmatprep.subr.mxu0 0.0
  %745 = vmatpush2.msra.mxu0 0.0
  %746 = vmatprep.subr.mxu0 0.0
  %747 = vmatpush2.msra.mxu0 0.0
  %748 = vmatprep.subr.mxu0 0.0
  %749 = vmatpush2.msra.mxu0 0.0
  %750 = vmatprep.subr.mxu0 0.0
  %751 = vmatpush2.msra.mxu0 0.0
  %752 = vmatprep.mubr.f32.mxu0 0.0
  %753 = vmatmul.mubr.f32.gmra.mxu0 %v686
  %v754 = vpop.f32.mrf.mxu0
  %v755 = vadd.f32 0.0, %v754
  %v756 = vpop.f32.mrf.mxu0
  %757 = vdwg.mxu0
  %v758 = vadd.f32 %v685, %v755
  %v759 = vxor.u32 %v758, 2147483648
  %v760 = vmul.f32 %v759, 1.442695
  %v761 = vpow.pop %v760
  %v762 = vadd.f32 %v761, 1.0
  %v763 = vrcp.pop %v762
  %v764 = vmul.f32 1.0, %v763
  %v765 = vadd.f32 %v755, %v118
  %767 = vrot.lane.b32.xlu0 %v765, 64
  %v768 = vpop.permute.xlu0 %767
  %v770 = vmul.f32 %v764, %v768
  %772 = vrot.lane.b32.xlu0 %v770, 64
  %v773 = vpop.permute.xlu0 %772
  %v775 = vadd.f32 %v685, %v773
  %v776 = vtanh.pop %v775
  %v777 = vsub.f32 1.0, %v764
  %779 = vrot.lane.b32.xlu0 %v776, 96
  %v780 = vpop.permute.xlu0 %779
  %v782 = vmul.f32 %v777, %v780
  %v783 = vmul.f32 %v764, %v677
  %v784 = vadd.f32 %v782, %v783
  %786 = vrot.lane.b32.xlu0 %v784, 96
  %v787 = vpop.permute.xlu0 %786
  %s789 = scalar_lea.vmem %s4, 24
  %790 = vst.msk [vmem:[%s789] sm:$0xf] %vm147, %v787
  %s791 = scalar_lea.vmem %s0, 28
  %v792 = vld [vmem:[%s791] sm:$0xf]
  %v793 = vsel %vm36, %v787, 0
  %795 = vmatprep.subr.mxu0 0.0
  %796 = vmatpush1.msra.mxu0 0.0
  %797 = vmatprep.subr.mxu0 0.0
  %798 = vmatpush1.msra.mxu0 0.0
  %799 = vmatprep.subr.mxu0 0.0
  %800 = vmatpush1.msra.mxu0 0.0
  %801 = vmatprep.subr.mxu0 0.0
  %802 = vmatpush1.msra.mxu0 0.0
  %803 = vmatprep.subr.mxu0 0.0
  %804 = vmatpush1.msra.mxu0 0.0
  %805 = vmatprep.subr.mxu0 0.0
  %806 = vmatpush1.msra.mxu0 0.0
  %807 = vmatprep.subr.mxu0 0.0
  %808 = vmatpush1.msra.mxu0 0.0
  %809 = vmatprep.subr.mxu0 0.0
  %810 = vmatpush1.msra.mxu0 0.0
  %811 = vmatprep.subr.mxu0 0.0
  %812 = vmatpush1.msra.mxu0 0.0
  %813 = vmatprep.subr.mxu0 0.0
  %814 = vmatpush1.msra.mxu0 0.0
  %815 = vmatprep.subr.mxu0 0.0
  %816 = vmatpush1.msra.mxu0 0.0
  %817 = vmatprep.subr.mxu0 0.0
  %818 = vmatpush1.msra.mxu0 0.0
  %819 = vmatprep.subr.mxu0 0.0
  %820 = vmatpush1.msra.mxu0 %v27
  %821 = vmatprep.subr.mxu0 0.0
  %822 = vmatpush1.msra.mxu0 %v26
  %823 = vmatprep.subr.mxu0 0.0
  %824 = vmatpush1.msra.mxu0 %v25
  %825 = vmatprep.subr.mxu0 0.0
  %826 = vmatpush1.msra.mxu0 %v24
  %827 = vmatprep.subr.mxu0 0.0
  %828 = vmatpush2.msra.mxu0 0.0
  %829 = vmatprep.subr.mxu0 0.0
  %830 = vmatpush2.msra.mxu0 0.0
  %831 = vmatprep.subr.mxu0 0.0
  %832 = vmatpush2.msra.mxu0 0.0
  %833 = vmatprep.subr.mxu0 0.0
  %834 = vmatpush2.msra.mxu0 0.0
  %835 = vmatprep.subr.mxu0 0.0
  %836 = vmatpush2.msra.mxu0 0.0
  %837 = vmatprep.subr.mxu0 0.0
  %838 = vmatpush2.msra.mxu0 0.0
  %839 = vmatprep.subr.mxu0 0.0
  %840 = vmatpush2.msra.mxu0 0.0
  %841 = vmatprep.subr.mxu0 0.0
  %842 = vmatpush2.msra.mxu0 0.0
  %843 = vmatprep.subr.mxu0 0.0
  %844 = vmatpush2.msra.mxu0 0.0
  %845 = vmatprep.subr.mxu0 0.0
  %846 = vmatpush2.msra.mxu0 0.0
  %847 = vmatprep.subr.mxu0 0.0
  %848 = vmatpush2.msra.mxu0 0.0
  %849 = vmatprep.subr.mxu0 0.0
  %850 = vmatpush2.msra.mxu0 0.0
  %851 = vmatprep.subr.mxu0 0.0
  %852 = vmatpush2.msra.mxu0 0.0
  %853 = vmatprep.subr.mxu0 0.0
  %854 = vmatpush2.msra.mxu0 0.0
  %855 = vmatprep.subr.mxu0 0.0
  %856 = vmatpush2.msra.mxu0 0.0
  %857 = vmatprep.subr.mxu0 0.0
  %858 = vmatpush2.msra.mxu0 0.0
  %859 = vmatprep.mubr.f32.mxu0 0.0
  %860 = vmatmul.mubr.f32.gmra.mxu0 %v793
  %v861 = vpop.f32.mrf.mxu0
  %v862 = vadd.f32 0.0, %v861
  %v863 = vpop.f32.mrf.mxu0
  %864 = vdwg.mxu0
  %v865 = vadd.f32 %v792, %v862
  %v866 = vxor.u32 %v865, 2147483648
  %v867 = vmul.f32 %v866, 1.442695
  %v868 = vpow.pop %v867
  %v869 = vadd.f32 %v868, 1.0
  %v870 = vrcp.pop %v869
  %v871 = vmul.f32 1.0, %v870
  %v872 = vadd.f32 %v862, %v118
  %874 = vrot.lane.b32.xlu0 %v872, 64
  %v875 = vpop.permute.xlu0 %874
  %v877 = vmul.f32 %v871, %v875
  %879 = vrot.lane.b32.xlu0 %v877, 64
  %v880 = vpop.permute.xlu0 %879
  %v882 = vadd.f32 %v792, %v880
  %v883 = vtanh.pop %v882
  %v884 = vsub.f32 1.0, %v871
  %886 = vrot.lane.b32.xlu0 %v883, 96
  %v887 = vpop.permute.xlu0 %886
  %v889 = vmul.f32 %v884, %v887
  %v890 = vmul.f32 %v871, %v784
  %v891 = vadd.f32 %v889, %v890
  %893 = vrot.lane.b32.xlu0 %v891, 96
  %v894 = vpop.permute.xlu0 %893
  %s896 = scalar_lea.vmem %s4, 28
  %897 = vst.msk [vmem:[%s896] sm:$0xf] %vm147, %v894
  %898 = vst.msk [vmem:[#allocation2] sm:$0xf] %vm147, %v894
  // Predicated region
  $region22: #{gru_forward_pallas.1} parent=0 // pred_check
    _
  $region23: #{gru_forward_pallas.1} parent=0 // pred_check_branch
    %900 = sbr.rel (0) target = $region25
  $region24: #{gru_forward_pallas.1} parent=0 // pred_region
    _
  $region25: #{gru_forward_pallas.1} parent=0 // pred_fallthru
    _
  // Predicated region
  $region26: #{gru_forward_pallas.1} parent=0 // pred_check
    _
  $region27: #{gru_forward_pallas.1} parent=0 // pred_check_branch
    %902 = sbr.rel (0) target = $region29
  $region28: #{gru_forward_pallas.1} parent=0 // pred_region
    _
  $region29: #{gru_forward_pallas.1} parent=0 // pred_fallthru
    _

</llo_original>
